<compile_context>
chip_gen: v7x
topology: tpu7x:2x2x1
jax: 0.10.0
libtpu: 0.0.40
codegen_flags: <defaults>
</compile_context>

<pallas_src>
import math

import jax
import jax.numpy as jnp
from jax.experimental import pallas as pl
from jax.experimental.pallas import tpu as pltpu


def _cdiv(a, b):
    return -(-a // b)


def _downsample_kernel(x_ref, w_ref, b_ref, o_ref):
    """One grid step: project `tr` input super-rows worth of patches.

    x_ref: (tr, ds, wo2, k2)   activations, all ki planes of tr super-rows
    w_ref: (ds, k2, o2)        conv weight as (ki, packed-K, packed-O), bf16
    b_ref: (1, o2)             bias (f32, lane-packed)
    o_ref: (tr*wo2, o2)        output tile (lane-dense when o2 == 128)
    """
    tr, ds, wo2, k2 = x_ref.shape
    bt = jnp.bfloat16

    # ki == 0 initializes the accumulator: no zeros materialize, no extra add.
    x0 = x_ref[:, 0, :, :].reshape(tr * wo2, k2).astype(bt)
    acc = jnp.dot(x0, w_ref[0], preferred_element_type=jnp.float32)
    for ki in range(1, ds):  # static & tiny (ds == downscale) -> unrolled
        xk = x_ref[:, ki, :, :].reshape(tr * wo2, k2).astype(bt)
        acc = acc + jnp.dot(xk, w_ref[ki], preferred_element_type=jnp.float32)

    o_ref[...] = (acc + b_ref[...]).astype(o_ref.dtype)


def _physical_vmem_bytes():
    """Per-TensorCore VMEM capacity, generation-aware with safe fallbacks."""
    try:
        info = pltpu.get_tpu_info()
        for attr in ("vmem_capacity_bytes", "vmem_size_bytes", "vmem_bytes"):
            v = getattr(info, attr, None)
            if v:
                return int(v)
    except Exception:
        pass
    try:
        kind = jax.devices()[0].device_kind.lower()
        if "v7" in kind:
            return 64 * 1024 * 1024
        if "v5" in kind or "v6" in kind:
            return 128 * 1024 * 1024
    except Exception:
        pass
    return 64 * 1024 * 1024  # conservative default (v7x-sized)


def _pick_tr(rows, ds, wo2, k2, o2, in_sz, out_sz, tile_budget, target_rows,
             out_sublane):
    """Rows of (N*Ho) per grid step: VMEM-budget-driven, then grid-shaped."""
    # VMEM per super-row: double-buffered x / out tiles + f32 accumulator
    # value + bf16-cast / relayout temporaries.
    row_bytes = (2 * ds * wo2 * k2 * in_sz
                 + 2 * wo2 * o2 * out_sz
                 + wo2 * o2 * 4
                 + 2 * wo2 * k2 * 2)
    tr_vmem = max(1, tile_budget // row_bytes)
    tr_tgt = max(1, target_rows // wo2)
    tr = max(1, min(rows, tr_vmem, tr_tgt))

    # Keep the output block's second-minor dim (tr*wo2) sublane-aligned when
    # the block does not cover the whole output.
    req = out_sublane // math.gcd(wo2, out_sublane)
    if tr < rows:
        tr = max(req, (tr // req) * req)

    nb = _cdiv(rows, tr)
    if nb == 1 and rows > req:      # give megacore / both v7x TCs work
        nb = 2
    if nb > 1 and nb % 2 == 1:      # prefer an even block count (v7x: 2 TCs)
        nb += 1
    if nb > 1:
        tr = _cdiv(rows, nb)
        tr = max(req, _cdiv(tr, req) * req)
        if tr >= rows:
            tr = rows
    return int(tr)


def downsampling_layer(x, weight, bias, *, downscale=2):
    """
    x      : (N, H, W, C)   NHWC activations (f32 or bf16)
    weight : (O, C, ds, ds) PyTorch Conv2d layout
    bias   : (O,)
    returns: (N, H/ds, W/ds, O), dtype == x.dtype
    """
    n, h, w, c = x.shape
    o_dim = weight.shape[0]
    ds = downscale
    assert h % ds == 0 and w % ds == 0, "spatial dims must be divisible by downscale"
    ho, wo = h // ds, w // ds
    rows = n * ho
    dsc = ds * c

    in_sz = x.dtype.itemsize
    out_dtype = x.dtype
    out_sz = out_dtype.itemsize
    in_sublane = max(1, 32 // in_sz)    # 8 for f32, 16 for bf16
    out_sublane = max(1, 32 // out_sz)

    # ---- lane-dense output packing factor --------------------------------
    # Pack `f` consecutive output patches along the lane axis so o2 >= 128.
    f = 1
    if o_dim < 128 and 128 % o_dim == 0 and wo % (128 // o_dim) == 0:
        f_try = 128 // o_dim
        wo2_try = wo // f_try
        aligned_nopack = (wo % in_sublane == 0)
        aligned_pack = (wo2_try % in_sublane == 0)
        # Prefer packing only when it keeps the in-kernel row merge aligned
        # (or when the unpacked merge would be unaligned anyway).
        if aligned_pack or not aligned_nopack:
            f = f_try
    wo2 = wo // f
    k2 = f * dsc
    o2 = f * o_dim

    # ---- host-side (tiny / free) re-layouts -------------------------------
    # Free contiguous reshape: x_r[r, ki, w2, q*dsc + kj*C + c]
    #   = x[n, ho*ds + ki, (w2*f + q)*ds + kj, c]   with r = n*Ho + ho.
    x_r = x.reshape(rows, ds, wo2, k2)

    # w_r[ki, kj*C + c, o] = weight[o, c, ki, kj]; block-diagonal expand when
    # the output is lane-packed (out column q*O+o <- input lanes q*dsc..).
    w_r = weight.transpose(2, 3, 1, 0).reshape(ds, dsc, o_dim)
    if f > 1:
        eye = jnp.eye(f, dtype=w_r.dtype)
        w_r = jnp.einsum("qp,kjo->kqjpo", eye, w_r).reshape(ds, k2, o2)
    w_r = w_r.astype(jnp.bfloat16)
    b_r = jnp.tile(bias.astype(jnp.float32), (f,)).reshape(1, o2)

    # ---- generation-aware VMEM budget & tile size --------------------------
    phys_vmem = _physical_vmem_bytes()
    vmem_cap = int(phys_vmem * 0.78)          # ~50 MiB on v7x, ~100 MiB v5e/v6e
    fixed = w_r.size * 2 + b_r.size * 4 + (2 << 20)   # resident weight/bias + slack
    tile_budget = int(vmem_cap * 0.85) - fixed
    target_rows = 2048 if phys_vmem <= 64 * 1024 * 1024 else 4096
    tr = _pick_tr(rows, ds, wo2, k2, o2, in_sz, out_sz, tile_budget,
                  target_rows, out_sublane)
    grid = (_cdiv(rows, tr),)

    m2 = rows * wo2
    flops = 2 * m2 * (ds * k2) * o2
    bytes_accessed = int(x_r.size * in_sz + w_r.size * 2 + b_r.size * 4
                         + m2 * o2 * out_sz)

    row_bytes = (2 * ds * wo2 * k2 * in_sz + 2 * wo2 * o2 * out_sz
                 + wo2 * o2 * 4 + 2 * wo2 * k2 * 2)
    vmem_est = tr * row_bytes + fixed
    vmem_limit = int(min(vmem_cap, max(vmem_est + (8 << 20), 32 << 20)))

    out = pl.pallas_call(
        _downsample_kernel,
        out_shape=jax.ShapeDtypeStruct((m2, o2), out_dtype),
        grid_spec=pltpu.PrefetchScalarGridSpec(
            num_scalar_prefetch=0,
            grid=grid,
            in_specs=[
                pl.BlockSpec((tr, ds, wo2, k2), lambda i: (i, 0, 0, 0)),
                pl.BlockSpec((ds, k2, o2), lambda i: (0, 0, 0)),
                pl.BlockSpec((1, o2), lambda i: (0, 0)),
            ],
            out_specs=pl.BlockSpec((tr * wo2, o2), lambda i: (i, 0)),
        ),
        compiler_params=pltpu.CompilerParams(
            dimension_semantics=("parallel",),
            vmem_limit_bytes=vmem_limit,
        ),
        cost_estimate=pl.CostEstimate(
            flops=flops, transcendentals=0, bytes_accessed=bytes_accessed),
    )(x_r, w_r, b_r)

    # (m2, o2) is byte-for-byte the contiguous (N, Ho, Wo, O) output.
    return out.reshape(n, ho, wo, o_dim)


def _reference(x, weight, bias, downscale=2):
    """Pure-jnp reference of the strided conv (correctness check)."""
    n, h, w, c = x.shape
    ds = downscale
    ho, wo = h // ds, w // ds
    xp = x.reshape(n, ho, ds, wo, ds, c).transpose(0, 1, 3, 2, 4, 5)
    return jnp.einsum("nhwijc,ocij->nhwo", xp, weight) + bias


if __name__ == "__main__":
    key = jax.random.PRNGKey(0)
    k_x, k_w = jax.random.split(key)

    # Small, shape-consistent config: downscale=2, d_embed=32, factor=2.
    n_batch, hh, ww, d_embed = 2, 16, 16, 32
    downscale, factor = 2, 2
    d_out = d_embed * factor

    x = jax.random.normal(k_x, (n_batch, hh, ww, d_embed), dtype=jnp.float32)

    # trunc_normal_(std=0.02) -> truncated normal in [-2, 2] std units, scaled.
    weight = (
        jax.random.truncated_normal(
            k_w, -2.0, 2.0, (d_out, d_embed, downscale, downscale), dtype=jnp.float32
        )
        * 0.02
    )
    bias = jnp.zeros((d_out,), dtype=jnp.float32)

    out = downsampling_layer(x, weight, bias, downscale=downscale)
    out = jax.block_until_ready(out)
    assert out.shape == (n_batch, hh // downscale, ww // downscale, d_out)

    # Check vs f32 reference (kernel feeds the MXU bf16 operands -> loose tol).
    ref = _reference(x, weight, bias, downscale=downscale)
    assert jnp.allclose(out, ref, atol=2e-2, rtol=2e-2), "mismatch vs f32 reference"

    # Tight check vs a reference using the same bf16-quantized operands.
    x_q = x.astype(jnp.bfloat16).astype(jnp.float32)
    w_q = weight.astype(jnp.bfloat16).astype(jnp.float32)
    ref_q = _reference(x_q, w_q, bias, downscale=downscale)
    assert jnp.allclose(out, ref_q, atol=2e-3, rtol=2e-3), "mismatch vs bf16 reference"

    print("KERNEL_OK")
</pallas_src>

<mosaic_0001>
module attributes {stable_mosaic.version = 11 : i64} {
  func.func @_downsample_kernel(%arg0: i32, %arg1: memref<8x2x8x64xf32, #tpu.memory_space<vmem>>, %arg2: memref<2x64x64xbf16, #tpu.memory_space<vmem>>, %arg3: memref<1x64xf32, #tpu.memory_space<vmem>>, %arg4: memref<64x64xf32, #tpu.memory_space<vmem>>) attributes {dimension_semantics = [#tpu.dimension_semantics<parallel>], iteration_bounds = array<i64: 2>, scalar_prefetch = 0 : i64, scratch_operands = 0 : i64, tpu.core_type = #tpu.core_type<tc>, window_params = [{transform_indices = @transform_0, window_bounds = array<i64: 8, 2, 8, 64>}, {pipeline_mode = #tpu.pipeline_mode<synchronous>, transform_indices = @transform_1, window_bounds = array<i64: 2, 64, 64>}, {pipeline_mode = #tpu.pipeline_mode<synchronous>, transform_indices = @transform_2, window_bounds = array<i64: 1, 64>}, {transform_indices = @transform_3, window_bounds = array<i64: 64, 64>}]} {
    %c0 = arith.constant 0 : index
    %c0_0 = arith.constant 0 : index
    %c0_1 = arith.constant 0 : index
    %c0_2 = arith.constant 0 : index
    %0 = vector.load %arg1[%c0, %c0_0, %c0_1, %c0_2] : memref<8x2x8x64xf32, #tpu.memory_space<vmem>>, vector<8x1x8x64xf32>
    %1 = vector.shape_cast %0 : vector<8x1x8x64xf32> to vector<8x8x64xf32>
    %2 = vector.shape_cast %1 : vector<8x8x64xf32> to vector<64x64xf32>
    %3 = arith.truncf %2 : vector<64x64xf32> to vector<64x64xbf16>
    %c0_3 = arith.constant 0 : index
    %c0_4 = arith.constant 0 : index
    %c0_5 = arith.constant 0 : index
    %4 = vector.load %arg2[%c0_3, %c0_4, %c0_5] : memref<2x64x64xbf16, #tpu.memory_space<vmem>>, vector<1x64x64xbf16>
    %5 = vector.shape_cast %4 : vector<1x64x64xbf16> to vector<64x64xbf16>
    %cst = arith.constant dense<0.000000e+00> : vector<64x64xf32>
    %6 = tpu.matmul %3, %5, %cst {dimension_numbers = #tpu.dot_dimension_numbers<[1], [0], [0], [1], [0, 0, 1, 1], [], []>} : vector<64x64xbf16>, vector<64x64xbf16>, vector<64x64xf32> -> vector<64x64xf32>
    %c0_6 = arith.constant 0 : index
    %c1 = arith.constant 1 : index
    %c0_7 = arith.constant 0 : index
    %c0_8 = arith.constant 0 : index
    %7 = vector.load %arg1[%c0_6, %c1, %c0_7, %c0_8] : memref<8x2x8x64xf32, #tpu.memory_space<vmem>>, vector<8x1x8x64xf32>
    %8 = vector.shape_cast %7 : vector<8x1x8x64xf32> to vector<8x8x64xf32>
    %9 = vector.shape_cast %8 : vector<8x8x64xf32> to vector<64x64xf32>
    %10 = arith.truncf %9 : vector<64x64xf32> to vector<64x64xbf16>
    %c1_9 = arith.constant 1 : index
    %c0_10 = arith.constant 0 : index
    %c0_11 = arith.constant 0 : index
    %11 = vector.load %arg2[%c1_9, %c0_10, %c0_11] : memref<2x64x64xbf16, #tpu.memory_space<vmem>>, vector<1x64x64xbf16>
    %12 = vector.shape_cast %11 : vector<1x64x64xbf16> to vector<64x64xbf16>
    %cst_12 = arith.constant dense<0.000000e+00> : vector<64x64xf32>
    %13 = tpu.matmul %10, %12, %cst_12 {dimension_numbers = #tpu.dot_dimension_numbers<[1], [0], [0], [1], [0, 0, 1, 1], [], []>} : vector<64x64xbf16>, vector<64x64xbf16>, vector<64x64xf32> -> vector<64x64xf32>
    %14 = arith.addf %6, %13 : vector<64x64xf32>
    %c0_13 = arith.constant 0 : index
    %c0_14 = arith.constant 0 : index
    %15 = vector.load %arg3[%c0_13, %c0_14] : memref<1x64xf32, #tpu.memory_space<vmem>>, vector<1x64xf32>
    %16 = vector.broadcast %15 : vector<1x64xf32> to vector<64x64xf32>
    %17 = arith.addf %14, %16 : vector<64x64xf32>
    %c0_15 = arith.constant 0 : index
    %c0_16 = arith.constant 0 : index
    %18 = vector.load %arg4[%c0_15, %c0_16] : memref<64x64xf32, #tpu.memory_space<vmem>>, vector<64x64xf32>
    tpu.vector_store %arg4[%c0_15, %c0_16], %17 {strides = array<i32>} : memref<64x64xf32, #tpu.memory_space<vmem>>, vector<64x64xf32>,
    return
  }
  func.func @transform_0(%arg0: i32) -> (i32, i32, i32, i32) {
    %c0_i32 = arith.constant 0 : i32
    %c0_i32_0 = arith.constant 0 : i32
    %c0_i32_1 = arith.constant 0 : i32
    %c0_i32_2 = arith.constant 0 : i32
    return %arg0, %c0_i32, %c0_i32_0, %c0_i32_1 : i32, i32, i32, i32
  }
  func.func @transform_1(%arg0: i32) -> (i32, i32, i32) {
    %c0_i32 = arith.constant 0 : i32
    %c0_i32_0 = arith.constant 0 : i32
    %c0_i32_1 = arith.constant 0 : i32
    %c0_i32_2 = arith.constant 0 : i32
    return %c0_i32, %c0_i32_0, %c0_i32_1 : i32, i32, i32
  }
  func.func @transform_2(%arg0: i32) -> (i32, i32) {
    %c0_i32 = arith.constant 0 : i32
    %c0_i32_0 = arith.constant 0 : i32
    %c0_i32_1 = arith.constant 0 : i32
    return %c0_i32, %c0_i32_0 : i32, i32
  }
  func.func @transform_3(%arg0: i32) -> (i32, i32) {
    %c0_i32 = arith.constant 0 : i32
    %c0_i32_0 = arith.constant 0 : i32
    return %arg0, %c0_i32 : i32, i32
  }
}

</mosaic_0001>

<llo_original>
// kernel: tpu_custom_call.1
$region0: #{tpu_custom_call.1}
  #allocation0 [shape = 'u32[]', space=smem, size = 0x4, offset = 0x4, fixed_abs, tag = 'smem constant byte address 0x4 - core index']
  #allocation1 [shape = 'u32[144,128]{1,0:T(1,128)}', space=vmem, size = 0x12000, scoped, tag = 'internal scratch']
  %s0 = inlined_call_operand.hbm [shape: f32[16,2,8,64], index: 0, kind: input, shape index: {}]
  %s1 = inlined_call_operand.hbm [shape: bf16[2,64,64], index: 1, kind: input, shape index: {}]
  %s2 = inlined_call_operand.vmem [shape: f32[1,64], index: 2, kind: input, shape index: {}]
  %s3 = inlined_call_operand.vmem [shape: f32[128,64], index: 3, kind: output, shape index: {}]
  %s4 = sld [smem:[#allocation0]]
  $region53: #{tpu_custom_call.1} parent=0
    _
  %s6 = ssub.s32 1, %s4
  %s7 = scalar_select 0, %s6, %s4
  $region1: #{tpu_custom_call.1} parent=0
    #allocation2 [shape = 'u8[131072]{0}', space=vmem, size = 0x20000, scoped, tag = 'input window, operand 0']
    #allocation3 [shape = 's32[2]{0}', space=sflag, size = 0x8, scoped, tag = 'scoped memory for tpu_custom_call.1']
    #allocation4 [shape = 'u8[32768]{0}', space=vmem, size = 0x8000, scoped, tag = 'input window, operand 1, single buffered']
    #allocation5 [shape = 's32[1]{0}', space=sflag, size = 0x4, scoped, tag = 'scoped memory for tpu_custom_call.1']
    %8 = vsyncpa [#allocation3], 0
    %s9 = scalar_lea.sflag [#allocation3], 1
    %10 = vsyncpa %s9, 0
    %11 = vsyncpa [#allocation5], 0
    loop: start=0, step=1, limit=4
    $region2: #{tpu_custom_call.1} parent=1 // loop_pre_header
      _
    $region3: #{tpu_custom_call.1} parent=1 // loop_header
      %s13 = sphi 0, %s17
      %p14 = scmp.ge.s32.totalorder %s13, 4
      %s23 = sphi 0, %s25
      %s26 = sphi 0, %s23
      %s27 = sphi 0, %s26
      %s43 = sphi 0, %s27
      %s47 = sphi 0, %s47
      %s49 = sphi 0, %s47
      %s50 = sphi 0, %s49
      %s64 = sphi 0, %s50
      %s68 = sphi 0, %s68
      %s70 = sphi 0, %s68
      %s71 = sphi 0, %s70
      %s85 = sphi 0, %s71
      %s91 = sphi 0, %s93
      %s94 = sphi 0, %s91
      %s95 = sphi 0, %s94
      %s111 = sphi 0, %s95
    $region4: #{tpu_custom_call.1} parent=1 // loop_header_branch
      %16 = sbr.rel (%p14) target = $region8
    $region5: #{tpu_custom_call.1} parent=1 // loop_body
      %s18 = ssub.s32 %s13, 1
      %s19 = ssub.s32 %s13, 2
      %s20 = sadd.s32 %s13, 1
      %s21 = ssub.s32 %s13, %s20
      %p22 = scmp.eq.s32.totalorder %s21, 0
      %s24 = sadd.s32 %s23, 1
      %s25 = scalar_select %p22, %s23, %s24
      %p28 = pneg %p22
      %p29 = scmp.eq.s32.totalorder %s13, 1
      %p30 = por %p28, %p29
      %p31 = scmp.ne.s32.totalorder %s23, %s26
      %p32 = scmp.eq.s32.totalorder %s13, 0
      %p33 = por %p31, %p32
      %p34 = scmp.ne.s32.totalorder %s23, %s26
      %p35 = scmp.eq.s32.totalorder %s18, 1
      %p36 = por %p34, %p35
      %p37 = scmp.ne.s32.totalorder %s26, %s27
      %p38 = scmp.eq.s32.totalorder %s18, 0
      %p39 = por %p37, %p38
      %p40 = scmp.ne.s32.totalorder %s26, %s27
      %p41 = scmp.eq.s32.totalorder %s19, 1
      %p42 = por %p40, %p41
      %p44 = scmp.ne.s32.totalorder %s27, %s43
      %p45 = scmp.eq.s32.totalorder %s19, 0
      %p46 = por %p44, %p45
      %s48 = sadd.s32 %s47, 1
      %p51 = scmp.eq.s32.totalorder %s13, 1
      %p52 = scmp.ne.s32.totalorder %s47, %s49
      %p53 = scmp.eq.s32.totalorder %s13, 0
      %p54 = por %p52, %p53
      %p55 = scmp.ne.s32.totalorder %s47, %s49
      %p56 = scmp.eq.s32.totalorder %s18, 1
      %p57 = por %p55, %p56
      %p58 = scmp.ne.s32.totalorder %s49, %s50
      %p59 = scmp.eq.s32.totalorder %s18, 0
      %p60 = por %p58, %p59
      %p61 = scmp.ne.s32.totalorder %s49, %s50
      %p62 = scmp.eq.s32.totalorder %s19, 1
      %p63 = por %p61, %p62
      %p65 = scmp.ne.s32.totalorder %s50, %s64
      %p66 = scmp.eq.s32.totalorder %s19, 0
      %p67 = por %p65, %p66
      %s69 = sadd.s32 %s68, 1
      %p72 = scmp.eq.s32.totalorder %s13, 1
      %p73 = scmp.ne.s32.totalorder %s68, %s70
      %p74 = scmp.eq.s32.totalorder %s13, 0
      %p75 = por %p73, %p74
      %p76 = scmp.ne.s32.totalorder %s68, %s70
      %p77 = scmp.eq.s32.totalorder %s18, 1
      %p78 = por %p76, %p77
      %p79 = scmp.ne.s32.totalorder %s70, %s71
      %p80 = scmp.eq.s32.totalorder %s18, 0
      %p81 = por %p79, %p80
      %p82 = scmp.ne.s32.totalorder %s70, %s71
      %p83 = scmp.eq.s32.totalorder %s19, 1
      %p84 = por %p82, %p83
      %p86 = scmp.ne.s32.totalorder %s71, %s85
      %p87 = scmp.eq.s32.totalorder %s19, 0
      %p88 = por %p86, %p87
      %s89 = ssub.s32 %s13, %s20
      %p90 = scmp.eq.s32.totalorder %s89, 0
      %s92 = sadd.s32 %s91, 1
      %s93 = scalar_select %p90, %s91, %s92
      %p96 = pneg %p90
      %p97 = scmp.eq.s32.totalorder %s13, 1
      %p98 = por %p96, %p97
      %p99 = scmp.ne.s32.totalorder %s91, %s94
      %p100 = scmp.eq.s32.totalorder %s13, 0
      %p101 = por %p99, %p100
      %p102 = scmp.ne.s32.totalorder %s91, %s94
      %p103 = scmp.eq.s32.totalorder %s18, 1
      %p104 = por %p102, %p103
      %p105 = scmp.ne.s32.totalorder %s94, %s95
      %p106 = scmp.eq.s32.totalorder %s18, 0
      %p107 = por %p105, %p106
      %p108 = scmp.ne.s32.totalorder %s94, %s95
      %p109 = scmp.eq.s32.totalorder %s19, 1
      %p110 = por %p108, %p109
      %p112 = scmp.ne.s32.totalorder %s95, %s111
      %p113 = scmp.eq.s32.totalorder %s19, 0
      %p114 = por %p112, %p113
      %p115 = scmp.le.s32.totalorder 1, %s13
      %p116 = scmp.lt.s32.totalorder %s13, 3
      %p117 = pnand %p115, %p116
      %p118 = pneg %p117
      // Predicated region
      $region9: #{tpu_custom_call.1} parent=5 // pred_check
        _
      $region10: #{tpu_custom_call.1} parent=5 // pred_check_branch
        %120 = sbr.rel (%p117) target = $region12
      $region11: #{tpu_custom_call.1} parent=5 // pred_region
        %s121 = ssub.s32 %s13, 1
        // Predicated region
        $region13: #{tpu_custom_call.1} parent=11 // pred_check
          %p122 = pneg %p60
        $region14: #{tpu_custom_call.1} parent=11 // pred_check_branch
          %124 = sbr.rel (%p122) target = $region16
        $region15: #{tpu_custom_call.1} parent=11 // pred_region
          %s126 = ssub.s32 1024, 1024
          %127 = vsyncadd [#allocation5], %s126
          %s128 = sshll.u32 [#allocation4], 4
          %s129 = int_to_ptr.vmem [resolvable:$true] %s128
          %134 = dma.hbm_to_vmem [thread:$0]  %s1, 1024, %s129, [#allocation5], 64, 64, 4
        $region16: #{tpu_custom_call.1} parent=11 // pred_fallthru
          _
        // Predicated region
        $region17: #{tpu_custom_call.1} parent=11 // pred_check
          %p135 = pneg %p81
        $region18: #{tpu_custom_call.1} parent=11 // pred_check_branch
          %137 = sbr.rel (%p135) target = $region20
        $region19: #{tpu_custom_call.1} parent=11 // pred_region
          _
        $region20: #{tpu_custom_call.1} parent=11 // pred_fallthru
          _
      $region12: #{tpu_custom_call.1} parent=5 // pred_fallthru
        _
      %p138 = scmp.lt.s32.totalorder %s13, 2
      // Predicated region
      $region21: #{tpu_custom_call.1} parent=5 // pred_check
        %p139 = pneg %p138
      $region22: #{tpu_custom_call.1} parent=5 // pred_check_branch
        %141 = sbr.rel (%p139) target = $region24
      $region23: #{tpu_custom_call.1} parent=5 // pred_region
        // Predicated region
        $region25: #{tpu_custom_call.1} parent=23 // pred_check
          %p142 = pneg %p33
        $region26: #{tpu_custom_call.1} parent=23 // pred_check_branch
          %144 = sbr.rel (%p142) target = $region28
        $region27: #{tpu_custom_call.1} parent=23 // pred_region
          %s145 = sand.u32 %s23, 1
          %s146 = scalar_lea.sflag [#allocation3], %s145
          %s147 = sand.u32 %s23, 1
          %s148 = smul.addr %s147, 128
          %s149 = scalar_lea.vmem [#allocation2], %s148
          %s150 = smul.u32 8, %s13
          %s152 = ssub.s32 2048, 2048
          %153 = vsyncadd %s146, %s152
          %s154 = smul.addr %s150, 2
          %s155 = smul.addr %s154, 128
          %s156 = scalar_lea.hbm %s0, %s155
          %s157 = sshll.u32 %s149, 4
          %s158 = int_to_ptr.vmem [resolvable:$true] %s157
          %163 = dma.hbm_to_vmem [thread:$0]  %s156, 2048, %s158, %s146, 128, 128, 8
        $region28: #{tpu_custom_call.1} parent=23 // pred_fallthru
          _
      $region24: #{tpu_custom_call.1} parent=5 // pred_fallthru
        _
      %p164 = scmp.le.s32.totalorder 1, %s13
      %p165 = scmp.lt.s32.totalorder %s13, 3
      %p166 = pnand %p164, %p165
      %p167 = pneg %p166
      // Predicated region
      $region29: #{tpu_custom_call.1} parent=5 // pred_check
        _
      $region30: #{tpu_custom_call.1} parent=5 // pred_check_branch
        %169 = sbr.rel (%p166) target = $region32
      $region31: #{tpu_custom_call.1} parent=5 // pred_region
        %s170 = ssub.s32 %s13, 1
        %s171 = sand.u32 %s26, 1
        %s172 = scalar_lea.sflag [#allocation3], %s171
        %s173 = sand.u32 %s26, 1
        %s174 = smul.addr %s173, 128
        %s175 = scalar_lea.vmem [#allocation2], %s174
        // Predicated region
        $region33: #{tpu_custom_call.1} parent=31 // pred_check
          %p176 = pneg %p39
        $region34: #{tpu_custom_call.1} parent=31 // pred_check_branch
          %178 = sbr.rel (%p176) target = $region36
        $region35: #{tpu_custom_call.1} parent=31 // pred_region
          %179 = dma.done %s172, 2048
        $region36: #{tpu_custom_call.1} parent=31 // pred_fallthru
          _
        // Predicated region
        $region37: #{tpu_custom_call.1} parent=31 // pred_check
          %p180 = pneg %p60
        $region38: #{tpu_custom_call.1} parent=31 // pred_check_branch
          %182 = sbr.rel (%p180) target = $region40
        $region39: #{tpu_custom_call.1} parent=31 // pred_region
          %183 = dma.done [#allocation5], 1024
        $region40: #{tpu_custom_call.1} parent=31 // pred_fallthru
          _
        %s184 = sand.u32 %s26, 1
        %s185 = scalar_lea.sflag [#allocation3], %s184
        %s186 = sand.u32 %s26, 1
        %s187 = smul.addr %s186, 128
        %s188 = scalar_lea.vmem [#allocation2], %s187
        %p189 = pneg %p39
        %p190 = pneg %p36
        %p191 = pneg %p60
        %p192 = pneg %p57
        %p193 = pneg %p81
        %p194 = pneg %p78
        %p195 = pneg %p107
        %p196 = pneg %p104
        %s197 = smul.u32 8, %s18
        %p198 = scmp.lt.s32.totalorder %s197, 15
        %s199 = scalar_select %p198, %s197, 15
        %s200 = smul.addr %s199, 8
        %s201 = scalar_lea.vmem %s3, %s200
        %s202 = smul.u32 8, %s18
        %s203 = smul.u32 8, %s18
        %p204 = scmp.lt.s32.totalorder %s203, 15
        %s205 = scalar_select %p204, %s203, 15
        %s206 = smul.addr %s205, 8
        %s207 = scalar_lea.vmem %s3, %s206
        %s208 = smul.u32 8, %s18
        %v210 = vld [vmem:[%s175] sm:$0xff]
        %v211 = vld [vmem:[%s175 + $0x10] sm:$0xff]
        %v212 = vld [vmem:[%s175 + $0x20] sm:$0xff]
        %v213 = vld [vmem:[%s175 + $0x30] sm:$0xff]
        %v214 = vld [vmem:[%s175 + $0x40] sm:$0xff]
        %v215 = vld [vmem:[%s175 + $0x50] sm:$0xff]
        %v216 = vld [vmem:[%s175 + $0x60] sm:$0xff]
        %v217 = vld [vmem:[%s175 + $0x70] sm:$0xff]
        %v218 = vpack.c.bf16 %v211, %v210
        %v219 = vpack.c.bf16 %v213, %v212
        %v220 = vpack.c.bf16 %v215, %v214
        %v221 = vpack.c.bf16 %v217, %v216
        %v222 = vld [vmem:[#allocation4] sm:$0xf]
        %v223 = vld [vmem:[#allocation4 + $0x4] sm:$0xf]
        %v224 = vld [vmem:[#allocation4 + $0x8] sm:$0xf]
        %v225 = vld [vmem:[#allocation4 + $0xc] sm:$0xf]
        %v226 = vld [vmem:[#allocation4 + $0x10] sm:$0xf]
        %v227 = vld [vmem:[#allocation4 + $0x14] sm:$0xf]
        %v228 = vld [vmem:[#allocation4 + $0x18] sm:$0xf]
        %v229 = vld [vmem:[#allocation4 + $0x1c] sm:$0xf]
        %s230 = scalar_lea.vmem %s175, 8 [#allocation2]
        %v231 = vld [vmem:[%s230] sm:$0xff]
        %v232 = vld [vmem:[%s230 + $0x10] sm:$0xff]
        %v233 = vld [vmem:[%s230 + $0x20] sm:$0xff]
        %v234 = vld [vmem:[%s230 + $0x30] sm:$0xff]
        %v235 = vld [vmem:[%s230 + $0x40] sm:$0xff]
        %v236 = vld [vmem:[%s230 + $0x50] sm:$0xff]
        %v237 = vld [vmem:[%s230 + $0x60] sm:$0xff]
        %v238 = vld [vmem:[%s230 + $0x70] sm:$0xff]
        %v239 = vpack.c.bf16 %v232, %v231
        %v240 = vpack.c.bf16 %v234, %v233
        %v241 = vpack.c.bf16 %v236, %v235
        %v242 = vpack.c.bf16 %v238, %v237
        %s243 = scalar_lea.vmem [#allocation4], 32
        %v244 = vld [vmem:[%s243] sm:$0xf]
        %v245 = vld [vmem:[%s243 + $0x4] sm:$0xf]
        %v246 = vld [vmem:[%s243 + $0x8] sm:$0xf]
        %v247 = vld [vmem:[%s243 + $0xc] sm:$0xf]
        %v248 = vld [vmem:[%s243 + $0x10] sm:$0xf]
        %v249 = vld [vmem:[%s243 + $0x14] sm:$0xf]
        %v250 = vld [vmem:[%s243 + $0x18] sm:$0xf]
        %v251 = vld [vmem:[%s243 + $0x1c] sm:$0xf]
        %v260 = vunpack.c.l.b16 %v244
        %v261 = vunpack.c.l.b16 %v245
        %v262 = vunpack.c.l.b16 %v246
        %v263 = vunpack.c.l.b16 %v247
        %v264 = vunpack.c.l.b16 %v248
        %v265 = vunpack.c.l.b16 %v249
        %v266 = vunpack.c.l.b16 %v250
        %v267 = vunpack.c.l.b16 %v251
        %v268 = vpack.c.b16 %v261, %v260
        %v269 = vpack.c.b16 %v263, %v262
        %v270 = vpack.c.b16 %v265, %v264
        %v271 = vpack.c.b16 %v267, %v266
        %vm276 = vcmask 523264
        %v278 = vsel %vm276, %v239, 0
        %v281 = vsel %vm276, %v240, 0
        %v284 = vsel %vm276, %v241, 0
        %v287 = vsel %vm276, %v242, 0
        %289 = vmatprep.subr.bf16.mxu0 0
        %290 = vmatpush1.bf16.msra.mxu0 %v268
        %291 = vmatprep.subr.bf16.mxu0 0
        %292 = vmatpush1.bf16.msra.mxu0 %v269
        %293 = vmatprep.subr.bf16.mxu0 0
        %294 = vmatpush1.bf16.msra.mxu0 %v270
        %295 = vmatprep.subr.bf16.mxu0 0
        %296 = vmatpush1.bf16.msra.mxu0 %v271
        %297 = vmatprep.subr.bf16.mxu0 0
        %298 = vmatpush1.bf16.msra.mxu0 0
        %299 = vmatprep.subr.bf16.mxu0 0
        %300 = vmatpush1.bf16.msra.mxu0 0
        %301 = vmatprep.subr.bf16.mxu0 0
        %302 = vmatpush1.bf16.msra.mxu0 0
        %303 = vmatprep.subr.bf16.mxu0 0
        %304 = vmatpush1.bf16.msra.mxu0 0
        %305 = vmatprep.subr.bf16.mxu0 0
        %306 = vmatpush1.bf16.msra.mxu0 0
        %307 = vmatprep.subr.bf16.mxu0 0
        %308 = vmatpush1.bf16.msra.mxu0 0
        %309 = vmatprep.subr.bf16.mxu0 0
        %310 = vmatpush1.bf16.msra.mxu0 0
        %311 = vmatprep.subr.bf16.mxu0 0
        %312 = vmatpush1.bf16.msra.mxu0 0
        %313 = vmatprep.subr.bf16.mxu0 0
        %314 = vmatpush1.bf16.msra.mxu0 0
        %315 = vmatprep.subr.bf16.mxu0 0
        %316 = vmatpush1.bf16.msra.mxu0 0
        %317 = vmatprep.subr.bf16.mxu0 0
        %318 = vmatpush1.bf16.msra.mxu0 0
        %319 = vmatprep.subr.bf16.mxu0 0
        %320 = vmatpush1.bf16.msra.mxu0 0
        %321 = vmatprep.mubr.bf16.mxu0 0
        %322 = vmatmul.mubr.bf16.gmra.mrb[0].mxu0 %v278
        %v323 = vpop.f32.mrb[0].mxu0
        %v324 = vadd.f32 0.0, %v323
        %v325 = vpop.f32.mrb[0].mxu0
        %v326 = vpop.f32.mrb[0].mxu0
        %v327 = vadd.f32 0.0, %v326
        %v328 = vpop.f32.mrb[0].mxu0
        %329 = vmatprep.mubr.bf16.mxu0 0
        %330 = vmatmul.mubr.bf16.gmra.mrb[0].mxu0 %v281
        %v331 = vpop.f32.mrb[0].mxu0
        %v332 = vadd.f32 0.0, %v331
        %v333 = vpop.f32.mrb[0].mxu0
        %v334 = vpop.f32.mrb[0].mxu0
        %v335 = vadd.f32 0.0, %v334
        %v336 = vpop.f32.mrb[0].mxu0
        %337 = vmatprep.mubr.bf16.mxu0 0
        %338 = vmatmul.mubr.bf16.gmra.mrb[0].mxu0 %v284
        %v339 = vpop.f32.mrb[0].mxu0
        %v340 = vadd.f32 0.0, %v339
        %v341 = vpop.f32.mrb[0].mxu0
        %v342 = vpop.f32.mrb[0].mxu0
        %v343 = vadd.f32 0.0, %v342
        %v344 = vpop.f32.mrb[0].mxu0
        %345 = vmatprep.mubr.bf16.mxu0 0
        %346 = vmatmul.mubr.bf16.gmra.mrb[0].mxu0 %v287
        %v347 = vpop.f32.mrb[0].mxu0
        %v348 = vadd.f32 0.0, %v347
        %v349 = vpop.f32.mrb[0].mxu0
        %v350 = vpop.f32.mrb[0].mxu0
        %v351 = vadd.f32 0.0, %v350
        %v352 = vpop.f32.mrb[0].mxu0
        %353 = vdwg.mxu0
        %v362 = vunpack.c.l.b16 %v222
        %v363 = vunpack.c.l.b16 %v223
        %v364 = vunpack.c.l.b16 %v224
        %v365 = vunpack.c.l.b16 %v225
        %v366 = vunpack.c.l.b16 %v226
        %v367 = vunpack.c.l.b16 %v227
        %v368 = vunpack.c.l.b16 %v228
        %v369 = vunpack.c.l.b16 %v229
        %v370 = vpack.c.b16 %v363, %v362
        %v371 = vpack.c.b16 %v365, %v364
        %v372 = vpack.c.b16 %v367, %v366
        %v373 = vpack.c.b16 %v369, %v368
        %v379 = vsel %vm276, %v218, 0
        %v382 = vsel %vm276, %v219, 0
        %v385 = vsel %vm276, %v220, 0
        %v388 = vsel %vm276, %v221, 0
        %390 = vmatprep.subr.bf16.mxu0 0
        %391 = vmatpush1.bf16.msra.mxu0 %v370
        %392 = vmatprep.subr.bf16.mxu0 0
        %393 = vmatpush1.bf16.msra.mxu0 %v371
        %394 = vmatprep.subr.bf16.mxu0 0
        %395 = vmatpush1.bf16.msra.mxu0 %v372
        %396 = vmatprep.subr.bf16.mxu0 0
        %397 = vmatpush1.bf16.msra.mxu0 %v373
        %398 = vmatprep.subr.bf16.mxu0 0
        %399 = vmatpush1.bf16.msra.mxu0 0
        %400 = vmatprep.subr.bf16.mxu0 0
        %401 = vmatpush1.bf16.msra.mxu0 0
        %402 = vmatprep.subr.bf16.mxu0 0
        %403 = vmatpush1.bf16.msra.mxu0 0
        %404 = vmatprep.subr.bf16.mxu0 0
        %405 = vmatpush1.bf16.msra.mxu0 0
        %406 = vmatprep.subr.bf16.mxu0 0
        %407 = vmatpush1.bf16.msra.mxu0 0
        %408 = vmatprep.subr.bf16.mxu0 0
        %409 = vmatpush1.bf16.msra.mxu0 0
        %410 = vmatprep.subr.bf16.mxu0 0
        %411 = vmatpush1.bf16.msra.mxu0 0
        %412 = vmatprep.subr.bf16.mxu0 0
        %413 = vmatpush1.bf16.msra.mxu0 0
        %414 = vmatprep.subr.bf16.mxu0 0
        %415 = vmatpush1.bf16.msra.mxu0 0
        %416 = vmatprep.subr.bf16.mxu0 0
        %417 = vmatpush1.bf16.msra.mxu0 0
        %418 = vmatprep.subr.bf16.mxu0 0
        %419 = vmatpush1.bf16.msra.mxu0 0
        %420 = vmatprep.subr.bf16.mxu0 0
        %421 = vmatpush1.bf16.msra.mxu0 0
        %422 = vmatprep.mubr.bf16.mxu0 0
        %423 = vmatmul.mubr.bf16.gmra.mrb[0].mxu0 %v379
        %v424 = vpop.f32.mrb[0].mxu0
        %v425 = vadd.f32 %v324, %v424
        %v426 = vpop.f32.mrb[0].mxu0
        %v427 = vpop.f32.mrb[0].mxu0
        %v428 = vadd.f32 %v327, %v427
        %v429 = vpop.f32.mrb[0].mxu0
        %430 = vmatprep.mubr.bf16.mxu0 0
        %431 = vmatmul.mubr.bf16.gmra.mrb[0].mxu0 %v382
        %v432 = vpop.f32.mrb[0].mxu0
        %v433 = vadd.f32 %v332, %v432
        %v434 = vpop.f32.mrb[0].mxu0
        %v435 = vpop.f32.mrb[0].mxu0
        %v436 = vadd.f32 %v335, %v435
        %v437 = vpop.f32.mrb[0].mxu0
        %438 = vmatprep.mubr.bf16.mxu0 0
        %439 = vmatmul.mubr.bf16.gmra.mrb[0].mxu0 %v385
        %v440 = vpop.f32.mrb[0].mxu0
        %v441 = vadd.f32 %v340, %v440
        %v442 = vpop.f32.mrb[0].mxu0
        %v443 = vpop.f32.mrb[0].mxu0
        %v444 = vadd.f32 %v343, %v443
        %v445 = vpop.f32.mrb[0].mxu0
        %446 = vmatprep.mubr.bf16.mxu0 0
        %447 = vmatmul.mubr.bf16.gmra.mrb[0].mxu0 %v388
        %v448 = vpop.f32.mrb[0].mxu0
        %v449 = vadd.f32 %v348, %v448
        %v450 = vpop.f32.mrb[0].mxu0
        %v451 = vpop.f32.mrb[0].mxu0
        %v452 = vadd.f32 %v351, %v451
        %v453 = vpop.f32.mrb[0].mxu0
        %454 = vdwg.mxu0
        %v455 = vld [vmem:[%s2] sm:$0x1]
        %v457 = vlaneseq
        %v458 = vshrl.u32 %v457, 7
        %v459 = vsub.s32 0, %v458
        %v460 = vrot.slane %v455, %v459
        %v462 = vadd.f32 %v425, %v460
        %v463 = vadd.f32 %v428, %v460
        %v464 = vadd.f32 %v433, %v460
        %v465 = vadd.f32 %v436, %v460
        %v466 = vadd.f32 %v441, %v460
        %v467 = vadd.f32 %v444, %v460
        %v468 = vadd.f32 %v449, %v460
        %v469 = vadd.f32 %v452, %v460
        %470 = vst.msk [vmem:[%s207] sm:$0xff] %vm276, %v462
        %471 = vst.msk [vmem:[%s207 + $0x8] sm:$0xff] %vm276, %v463
        %472 = vst.msk [vmem:[%s207 + $0x10] sm:$0xff] %vm276, %v464
        %473 = vst.msk [vmem:[%s207 + $0x18] sm:$0xff] %vm276, %v465
        %474 = vst.msk [vmem:[%s207 + $0x20] sm:$0xff] %vm276, %v466
        %475 = vst.msk [vmem:[%s207 + $0x28] sm:$0xff] %vm276, %v467
        %476 = vst.msk [vmem:[%s207 + $0x30] sm:$0xff] %vm276, %v468
        %477 = vst.msk [vmem:[%s207 + $0x38] sm:$0xff] %vm276, %v469
        %s478 = smul.u32 8, %s18
        %p479 = scmp.lt.s32.totalorder %s478, 15
        %s480 = scalar_select %p479, %s478, 15
        %s481 = smul.addr %s480, 8
        %s482 = scalar_lea.vmem %s3, %s481
        // Predicated region
        $region41: #{tpu_custom_call.1} parent=31 // pred_check
          %p483 = pneg %p104
        $region42: #{tpu_custom_call.1} parent=31 // pred_check_branch
          %485 = sbr.rel (%p483) target = $region44
        $region43: #{tpu_custom_call.1} parent=31 // pred_region
          %s486 = smul.u32 8, %s18
        $region44: #{tpu_custom_call.1} parent=31 // pred_fallthru
          _
      $region32: #{tpu_custom_call.1} parent=5 // pred_fallthru
        _
      %p487 = scmp.le.s32.totalorder 2, %s13
      // Predicated region
      $region45: #{tpu_custom_call.1} parent=5 // pred_check
        %p488 = pneg %p487
      $region46: #{tpu_custom_call.1} parent=5 // pred_check_branch
        %490 = sbr.rel (%p488) target = $region48
      $region47: #{tpu_custom_call.1} parent=5 // pred_region
        %s491 = ssub.s32 %s13, 2
        // Predicated region
        $region49: #{tpu_custom_call.1} parent=47 // pred_check
          %p492 = pneg %p110
        $region50: #{tpu_custom_call.1} parent=47 // pred_check_branch
          %494 = sbr.rel (%p492) target = $region52
        $region51: #{tpu_custom_call.1} parent=47 // pred_region
          %s495 = smul.u32 8, %s19
          %p496 = scmp.lt.s32.totalorder %s495, 15
          %s497 = scalar_select %p496, %s495, 15
          %s498 = smul.addr %s497, 8
          %s499 = scalar_lea.vmem %s3, %s498
        $region52: #{tpu_custom_call.1} parent=47 // pred_fallthru
          _
      $region48: #{tpu_custom_call.1} parent=5 // pred_fallthru
        _
    $region6: #{tpu_custom_call.1} parent=1 // loop_footer
      %s17 = sadd.s32 1, %s13
    $region7: #{tpu_custom_call.1} parent=1 // loop_footer_branch
      %12 = sbr.rel target = $region3
    $region8: #{tpu_custom_call.1} parent=1 // loop_exit
      _
    %500 = vsyncpa [#allocation3], 1
    %s501 = scalar_lea.sflag [#allocation3], 1
    %502 = vsyncpa %s501, 1
    %503 = vsyncpa [#allocation5], 1

</llo_original>
